<compile_context>
chip_gen: v7x
topology: tpu7x:2x2x1
jax: 0.10.0
libtpu: 0.0.40
codegen_flags: <defaults>
</compile_context>

<pallas_src>
import math
import functools

import jax
import jax.numpy as jnp
from jax import lax
from jax.experimental import pallas as pl
from jax.experimental.pallas import tpu as pltpu


def _round_up(x, m):
    return (x + m - 1) // m * m


def _min_sublane(dtype):
    # Minimum second-to-last tile dim per dtype width (32-bit: 8, 16-bit: 16, 8-bit: 32).
    return {4: 8, 2: 16, 1: 32}[jnp.dtype(dtype).itemsize]


def _pick_tile(n, sub, cap=256):
    """Largest power-of-two tile <= cap that is a multiple of `sub` and divides n."""
    c = cap
    while c >= sub:
        if n % c == 0:
            return c
        c //= 2
    return n  # fall back to full dim (always legal: block == array dim)


# ----------------------------------------------------------------------------
# One-time parameter packing (do this OUTSIDE any step loop).
# ----------------------------------------------------------------------------
def prepare_rnn_cell_params(weight_ih, weight_hh, bias_ih=None, bias_hh=None,
                            dtype=jnp.float32):
    """Pack/transpose/pad weights once.

    Returns (wx, wh, b):
      wx: (I_pad, H_pad)     W_ih^T zero-padded, cast to `dtype`
      wh: (H_pad, H_pad)     W_hh^T zero-padded, cast to `dtype`
      b : (1,    H_pad) f32  b_ih + b_hh (zeros if bias is disabled)
    I_pad / H_pad are multiples of 128 (lane-dense matmuls, full-width stores).
    Use dtype=jnp.bfloat16 for MXU-native weights (f32 accumulation is kept in
    the kernels; activation/carry stay f32).
    """
    H, I = weight_ih.shape
    assert weight_hh.shape == (H, H)
    I_pad = _round_up(I, 128)
    H_pad = _round_up(H, 128)
    wx = jnp.pad(weight_ih.T.astype(jnp.float32), ((0, I_pad - I), (0, H_pad - H)))
    wh = jnp.pad(weight_hh.T.astype(jnp.float32), ((0, H_pad - H), (0, H_pad - H)))
    if bias_ih is None:
        b = jnp.zeros((H,), jnp.float32)
    else:
        b = bias_ih.astype(jnp.float32) + bias_hh.astype(jnp.float32)
    b = jnp.pad(b, (0, H_pad - H))[None, :]
    return wx.astype(dtype), wh.astype(dtype), b


# ----------------------------------------------------------------------------
# Single-step RNNCell kernel (the module's forward).
# ----------------------------------------------------------------------------
def _rnn_cell_kernel(x_ref, h_ref, wx_ref, wh_ref, b_ref, out_ref, *, nonlinearity):
    acc = jnp.dot(x_ref[...], wx_ref[...], preferred_element_type=jnp.float32)
    acc = acc + jnp.dot(h_ref[...], wh_ref[...], preferred_element_type=jnp.float32)
    acc = acc + b_ref[...]          # (1, TN) broadcast over rows: cheap VPU add
    if nonlinearity == "tanh":
        out = jnp.tanh(acc)         # EUP, f32 (keeps v5e happy: no bf16 EUP path)
    else:                           # "relu"
        out = jnp.maximum(acc, 0.0)
    out_ref[...] = out.astype(out_ref.dtype)


def rnn_cell_padded(x_p, h_p, wx, wh, b, nonlinearity="tanh", out_dtype=None):
    """Single step on pre-padded operands; returns the padded (B_pad, H_pad) h'.

    Keep operands persistently padded when stepping in a host loop to avoid
    pad/slice launches around every microsecond-scale pallas_call.
    """
    B_pad, I_pad = x_p.shape
    H_pad = wh.shape[1]
    out_dtype = x_p.dtype if out_dtype is None else out_dtype
    sub = max(_min_sublane(x_p.dtype), _min_sublane(out_dtype))
    TB = _pick_tile(B_pad, sub, cap=256)
    TN = 256 if H_pad % 256 == 0 else 128
    grid = (H_pad // TN, B_pad // TB)   # hidden OUTER -> each weight tile DMA'd once

    kernel = functools.partial(_rnn_cell_kernel, nonlinearity=nonlinearity)
    # TODO(synk): for very large I+H (>~8k) add an innermost "arbitrary" K axis
    # with an f32 accumulator scratch (and raise vmem_limit_bytes on v6e) so the
    # per-program weight block stays bounded within v7x's 64 MiB VMEM.
    return pl.pallas_call(
        kernel,
        out_shape=jax.ShapeDtypeStruct((B_pad, H_pad), out_dtype),
        grid=grid,
        in_specs=[
            pl.BlockSpec((TB, I_pad), lambda j, i: (i, 0)),   # x       (per batch tile)
            pl.BlockSpec((TB, H_pad), lambda j, i: (i, 0)),   # h       (per batch tile)
            pl.BlockSpec((I_pad, TN), lambda j, i: (0, j)),   # W_ih^T  (per hidden tile)
            pl.BlockSpec((H_pad, TN), lambda j, i: (0, j)),   # W_hh^T  (per hidden tile)
            pl.BlockSpec((1, TN),     lambda j, i: (0, j)),   # bias    (per hidden tile)
        ],
        out_specs=pl.BlockSpec((TB, TN), lambda j, i: (i, j)),
        compiler_params=pltpu.CompilerParams(
            dimension_semantics=("parallel", "parallel")),
    )(x_p, h_p, wx, wh, b)


def rnn_cell(x, h, wx, wh, b, nonlinearity="tanh"):
    """torch.nn.RNNCell.forward. x: (B, I), h: (B, H) -> (B, H)."""
    B, I = x.shape
    H = h.shape[1]
    I_pad, H_pad = wx.shape
    cdt = wx.dtype
    out_dtype = x.dtype
    sub = max(_min_sublane(cdt), _min_sublane(out_dtype))
    B_pad = _round_up(max(B, sub), sub)
    x_p = jnp.pad(x, ((0, B_pad - B), (0, I_pad - I))).astype(cdt)
    h_p = jnp.pad(h, ((0, B_pad - B), (0, H_pad - H))).astype(cdt)
    out = rnn_cell_padded(x_p, h_p, wx, wh, b, nonlinearity, out_dtype)
    return out[:B, :H]


# ----------------------------------------------------------------------------
# Sequence path.
# Phase 1: U_t = x_t @ W_ih^T + b for ALL timesteps in one big parallel matmul.
# ----------------------------------------------------------------------------
def _proj_kernel(x_ref, w_ref, b_ref, o_ref):
    acc = jnp.dot(x_ref[...], w_ref[...], preferred_element_type=jnp.float32)
    o_ref[...] = (acc + b_ref[...]).astype(o_ref.dtype)


def _input_projection(x2d, wx, b):
    """(M_pad, I_pad) @ (I_pad, H_pad) + b -> f32 (M_pad, H_pad); M = T*B_pad."""
    M_pad, I_pad = x2d.shape
    H_pad = wx.shape[1]
    sub = _min_sublane(x2d.dtype)
    TM = _pick_tile(M_pad, sub, cap=512)
    TN = 256 if H_pad % 256 == 0 else 128
    grid = (H_pad // TN, M_pad // TM)   # hidden OUTER -> weight tiles DMA'd once
    return pl.pallas_call(
        _proj_kernel,
        out_shape=jax.ShapeDtypeStruct((M_pad, H_pad), jnp.float32),
        grid=grid,
        in_specs=[
            pl.BlockSpec((TM, I_pad), lambda j, i: (i, 0)),
            pl.BlockSpec((I_pad, TN), lambda j, i: (0, j)),
            pl.BlockSpec((1, TN),     lambda j, i: (0, j)),
        ],
        out_specs=pl.BlockSpec((TM, TN), lambda j, i: (i, j)),
        compiler_params=pltpu.CompilerParams(
            dimension_semantics=("parallel", "parallel")),
    )(x2d, wx, b)


# ----------------------------------------------------------------------------
# Phase 2: serial recurrence, TT timesteps per grid step, W_hh^T resident.
# ----------------------------------------------------------------------------
def _rnn_seq_kernel(u_ref, wh_ref, h0_ref, out_ref, h_scr, *, nonlinearity, tt):
    @pl.when(pl.program_id(1) == 0)          # first time-chunk of this batch tile
    def _():
        h_scr[...] = h0_ref[...]             # h carried in f32 VMEM scratch

    def step(s, carry):
        # TODO(synk): with bf16 weights this cast requantizes the carried state
        # every step; validated with relaxed tolerance (keep f32 weights for
        # bit-faithful parity with the PyTorch reference).
        h_in = h_scr[...].astype(wh_ref.dtype)
        a = u_ref[s] + jnp.dot(h_in, wh_ref[...], preferred_element_type=jnp.float32)
        if nonlinearity == "tanh":
            h_new = jnp.tanh(a)
        else:
            h_new = jnp.maximum(a, 0.0)
        h_scr[...] = h_new
        out_ref[s] = h_new.astype(out_ref.dtype)
        return carry

    lax.fori_loop(0, tt, step, 0, unroll=True)


def rnn_sequence(x_seq, h0, wx, wh, b, nonlinearity="tanh", tt=None):
    """Run the cell over a sequence. x_seq: (T, B, I), h0: (B, H) -> (T, B, H)."""
    T, B, I = x_seq.shape
    H = h0.shape[1]
    I_pad, H_pad = wx.shape
    cdt = wx.dtype
    out_dtype = x_seq.dtype
    sub = max(_min_sublane(cdt), _min_sublane(out_dtype))
    B_pad = _round_up(max(B, sub), sub)
    if tt is None:
        tt = min(16, T)                  # timesteps per grid step (amortize overhead)
    T_pad = _round_up(T, tt)

    x_p = jnp.pad(x_seq, ((0, T_pad - T), (0, B_pad - B), (0, I_pad - I))).astype(cdt)
    h0_p = jnp.pad(h0.astype(jnp.float32), ((0, B_pad - B), (0, H_pad - H)))

    # Phase 1: input projection over all timesteps at once (MXU-efficient M).
    u = _input_projection(x_p.reshape(T_pad * B_pad, I_pad), wx, b)
    u = u.reshape(T_pad, B_pad, H_pad)

    # Phase 2: recurrence. Leading batch-tile axis is "parallel" (v7x megacore);
    # time-chunk axis is "arbitrary" (carried state in VMEM scratch).
    TB = _pick_tile(B_pad, sub, cap=256)
    grid = (B_pad // TB, T_pad // tt)

    # TODO(synk): for H_pad >= ~4k keep wh in bf16 so the resident (H_pad, H_pad)
    # block fits v7x's 64 MiB VMEM (and the 32 MiB scoped default elsewhere).
    kernel = functools.partial(_rnn_seq_kernel, nonlinearity=nonlinearity, tt=tt)
    out = pl.pallas_call(
        kernel,
        out_shape=jax.ShapeDtypeStruct((T_pad, B_pad, H_pad), out_dtype),
        grid=grid,
        in_specs=[
            pl.BlockSpec((tt, TB, H_pad), lambda bi, ti: (ti, bi, 0)),  # U chunk (streamed)
            pl.BlockSpec((H_pad, H_pad),  lambda bi, ti: (0, 0)),       # W_hh^T  (resident)
            pl.BlockSpec((TB, H_pad),     lambda bi, ti: (bi, 0)),      # h0 per batch tile
        ],
        out_specs=pl.BlockSpec((tt, TB, H_pad), lambda bi, ti: (ti, bi, 0)),
        scratch_shapes=[pltpu.VMEM((TB, H_pad), jnp.float32)],
        compiler_params=pltpu.CompilerParams(
            dimension_semantics=("parallel", "arbitrary")),
    )(u, wh, h0_p)
    return out[:T, :B, :H]


# ----------------------------------------------------------------------------
# Pure-JAX reference (matches torch.nn.RNNCell semantics)
# ----------------------------------------------------------------------------
def _rnn_cell_ref(x, h, weight_ih, weight_hh, bias_ih, bias_hh, nonlinearity="tanh"):
    a = x @ weight_ih.T + bias_ih + h @ weight_hh.T + bias_hh
    return jnp.tanh(a) if nonlinearity == "tanh" else jnp.maximum(a, 0.0)


if __name__ == "__main__":
    batch, input_size, hidden_size, seq_len = 2, 16, 32, 8

    key = jax.random.PRNGKey(0)
    kx, kh, kxs, k1, k2, k3, k4 = jax.random.split(key, 7)

    # reset_parameters(): uniform(-stdv, stdv), stdv = 1/sqrt(hidden_size)
    stdv = 1.0 / math.sqrt(hidden_size)
    weight_ih = jax.random.uniform(k1, (hidden_size, input_size), jnp.float32, -stdv, stdv)
    weight_hh = jax.random.uniform(k2, (hidden_size, hidden_size), jnp.float32, -stdv, stdv)
    bias_ih = jax.random.uniform(k3, (hidden_size,), jnp.float32, -stdv, stdv)
    bias_hh = jax.random.uniform(k4, (hidden_size,), jnp.float32, -stdv, stdv)

    x = jax.random.normal(kx, (batch, input_size), jnp.float32)
    h0 = jax.random.normal(kh, (batch, hidden_size), jnp.float32)
    x_seq = jax.random.normal(kxs, (seq_len, batch, input_size), jnp.float32)

    # --- single-step forward (the module's forward), both nonlinearities (f32) ---
    wx, wh, b = prepare_rnn_cell_params(weight_ih, weight_hh, bias_ih, bias_hh)
    for nl in ("tanh", "relu"):
        h_new = jax.block_until_ready(rnn_cell(x, h0, wx, wh, b, nonlinearity=nl))
        h_ref = _rnn_cell_ref(x, h0, weight_ih, weight_hh, bias_ih, bias_hh, nl)
        assert h_new.shape == (batch, hidden_size)
        assert jnp.allclose(h_new, h_ref, atol=1e-5, rtol=1e-5), nl

    # --- bf16 weights (f32 accumulate + f32 activation), relaxed tolerance ---
    wx16, wh16, b16 = prepare_rnn_cell_params(weight_ih, weight_hh, bias_ih, bias_hh,
                                              dtype=jnp.bfloat16)
    h_bf = jax.block_until_ready(rnn_cell(x, h0, wx16, wh16, b16, "tanh"))
    h_ref = _rnn_cell_ref(x, h0, weight_ih, weight_hh, bias_ih, bias_hh, "tanh")
    assert jnp.allclose(h_bf, h_ref, atol=5e-2, rtol=5e-2)

    # --- sequence path: hoisted input projection + chunked recurrence ---
    hs = jax.block_until_ready(rnn_sequence(x_seq, h0, wx, wh, b, "tanh"))
    h_cur = h0
    refs = []
    for t in range(seq_len):
        h_cur = _rnn_cell_ref(x_seq[t], h_cur, weight_ih, weight_hh,
                              bias_ih, bias_hh, "tanh")
        refs.append(h_cur)
    hs_ref = jnp.stack(refs)
    assert hs.shape == (seq_len, batch, hidden_size)
    assert jnp.allclose(hs, hs_ref, atol=1e-5, rtol=1e-5)

    print("KERNEL_OK")
</pallas_src>

<mosaic_0001>
module attributes {stable_mosaic.version = 11 : i64} {
  func.func @_rnn_cell_kernel(%arg0: i32, %arg1: i32, %arg2: memref<8x128xf32, #tpu.memory_space<vmem>>, %arg3: memref<8x128xf32, #tpu.memory_space<vmem>>, %arg4: memref<128x128xf32, #tpu.memory_space<vmem>>, %arg5: memref<128x128xf32, #tpu.memory_space<vmem>>, %arg6: memref<1x128xf32, #tpu.memory_space<vmem>>, %arg7: memref<8x128xf32, #tpu.memory_space<vmem>>) attributes {dimension_semantics = [#tpu.dimension_semantics<parallel>, #tpu.dimension_semantics<parallel>], iteration_bounds = array<i64: 1, 1>, scalar_prefetch = 0 : i64, scratch_operands = 0 : i64, tpu.core_type = #tpu.core_type<tc>, window_params = [{transform_indices = @transform_0, window_bounds = array<i64: 8, 128>}, {transform_indices = @transform_1, window_bounds = array<i64: 8, 128>}, {transform_indices = @transform_2, window_bounds = array<i64: 128, 128>}, {transform_indices = @transform_3, window_bounds = array<i64: 128, 128>}, {transform_indices = @transform_4, window_bounds = array<i64: 1, 128>}, {transform_indices = @transform_5, window_bounds = array<i64: 8, 128>}]} {
    %c0 = arith.constant 0 : index
    %c0_0 = arith.constant 0 : index
    %0 = vector.load %arg2[%c0, %c0_0] : memref<8x128xf32, #tpu.memory_space<vmem>>, vector<8x128xf32>
    %c0_1 = arith.constant 0 : index
    %c0_2 = arith.constant 0 : index
    %1 = vector.load %arg4[%c0_1, %c0_2] : memref<128x128xf32, #tpu.memory_space<vmem>>, vector<128x128xf32>
    %cst = arith.constant dense<0.000000e+00> : vector<8x128xf32>
    %2 = tpu.matmul %0, %1, %cst {dimension_numbers = #tpu.dot_dimension_numbers<[1], [0], [0], [1], [0, 0, 1, 1], [], []>} : vector<8x128xf32>, vector<128x128xf32>, vector<8x128xf32> -> vector<8x128xf32>
    %c0_3 = arith.constant 0 : index
    %c0_4 = arith.constant 0 : index
    %3 = vector.load %arg3[%c0_3, %c0_4] : memref<8x128xf32, #tpu.memory_space<vmem>>, vector<8x128xf32>
    %c0_5 = arith.constant 0 : index
    %c0_6 = arith.constant 0 : index
    %4 = vector.load %arg5[%c0_5, %c0_6] : memref<128x128xf32, #tpu.memory_space<vmem>>, vector<128x128xf32>
    %cst_7 = arith.constant dense<0.000000e+00> : vector<8x128xf32>
    %5 = tpu.matmul %3, %4, %cst_7 {dimension_numbers = #tpu.dot_dimension_numbers<[1], [0], [0], [1], [0, 0, 1, 1], [], []>} : vector<8x128xf32>, vector<128x128xf32>, vector<8x128xf32> -> vector<8x128xf32>
    %6 = arith.addf %2, %5 : vector<8x128xf32>
    %c0_8 = arith.constant 0 : index
    %c0_9 = arith.constant 0 : index
    %7 = vector.load %arg6[%c0_8, %c0_9] : memref<1x128xf32, #tpu.memory_space<vmem>>, vector<1x128xf32>
    %8 = vector.broadcast %7 : vector<1x128xf32> to vector<8x128xf32>
    %9 = arith.addf %6, %8 : vector<8x128xf32>
    %10 = math.tanh %9 : vector<8x128xf32>
    %c0_10 = arith.constant 0 : index
    %c0_11 = arith.constant 0 : index
    %11 = vector.load %arg7[%c0_10, %c0_11] : memref<8x128xf32, #tpu.memory_space<vmem>>, vector<8x128xf32>
    tpu.vector_store %arg7[%c0_10, %c0_11], %10 {strides = array<i32>} : memref<8x128xf32, #tpu.memory_space<vmem>>, vector<8x128xf32>,
    return
  }
  func.func @transform_0(%arg0: i32, %arg1: i32) -> (i32, i32) {
    %c0_i32 = arith.constant 0 : i32
    %c0_i32_0 = arith.constant 0 : i32
    return %arg1, %c0_i32 : i32, i32
  }
  func.func @transform_1(%arg0: i32, %arg1: i32) -> (i32, i32) {
    %c0_i32 = arith.constant 0 : i32
    %c0_i32_0 = arith.constant 0 : i32
    return %arg1, %c0_i32 : i32, i32
  }
  func.func @transform_2(%arg0: i32, %arg1: i32) -> (i32, i32) {
    %c0_i32 = arith.constant 0 : i32
    %c0_i32_0 = arith.constant 0 : i32
    return %c0_i32, %arg0 : i32, i32
  }
  func.func @transform_3(%arg0: i32, %arg1: i32) -> (i32, i32) {
    %c0_i32 = arith.constant 0 : i32
    %c0_i32_0 = arith.constant 0 : i32
    return %c0_i32, %arg0 : i32, i32
  }
  func.func @transform_4(%arg0: i32, %arg1: i32) -> (i32, i32) {
    %c0_i32 = arith.constant 0 : i32
    %c0_i32_0 = arith.constant 0 : i32
    return %c0_i32, %arg0 : i32, i32
  }
  func.func @transform_5(%arg0: i32, %arg1: i32) -> (i32, i32) {
    %c0_i32 = arith.constant 0 : i32
    return %arg1, %arg0 : i32, i32
  }
}

</mosaic_0001>

<llo_original>
// kernel: tpu_custom_call.1
$region0: #{tpu_custom_call.1}
  #allocation0 [shape = 'u32[]', space=smem, size = 0x4, offset = 0x4, fixed_abs, tag = 'smem constant byte address 0x4 - core index']
  #allocation1 [shape = 'u32[144,128]{1,0:T(1,128)}', space=vmem, size = 0x12000, scoped, tag = 'internal scratch']
  %s0 = inlined_call_operand.hbm [shape: f32[8,128], index: 0, kind: input, shape index: {}]
  %s1 = inlined_call_operand.hbm [shape: f32[8,128], index: 1, kind: input, shape index: {}]
  %s2 = inlined_call_operand.hbm [shape: f32[128,128], index: 2, kind: input, shape index: {}]
  %s3 = inlined_call_operand.hbm [shape: f32[128,128], index: 3, kind: input, shape index: {}]
  %s4 = inlined_call_operand.vmem [shape: f32[1,128], index: 4, kind: input, shape index: {}]
  %s5 = inlined_call_operand.hbm [shape: f32[8,128], index: 5, kind: output, shape index: {}]
  %s6 = sld [smem:[#allocation0]]
  $region46: #{tpu_custom_call.1} parent=0
    _
  %s8 = ssub.s32 1, %s6
  %s9 = scalar_select 0, %s8, %s6
  $region1: #{tpu_custom_call.1} parent=0
    #allocation2 [shape = 'u8[4096]{0}', space=vmem, size = 0x1000, scoped, tag = 'input window, operand 0, single buffered']
    #allocation3 [shape = 's32[1]{0}', space=sflag, size = 0x4, scoped, tag = 'scoped memory for tpu_custom_call.1']
    #allocation4 [shape = 's32[1]{0}', space=sflag, size = 0x4, scoped, tag = 'scoped memory for tpu_custom_call.1']
    #allocation5 [shape = 'u8[4096]{0}', space=vmem, size = 0x1000, scoped, tag = 'input window, operand 1, single buffered']
    #allocation6 [shape = 's32[1]{0}', space=sflag, size = 0x4, scoped, tag = 'scoped memory for tpu_custom_call.1']
    #allocation7 [shape = 'u8[65536]{0}', space=vmem, size = 0x10000, scoped, tag = 'input window, operand 2, single buffered']
    #allocation8 [shape = 'u8[65536]{0}', space=vmem, size = 0x10000, scoped, tag = 'input window, operand 3, single buffered']
    #allocation9 [shape = 's32[1]{0}', space=sflag, size = 0x4, scoped, tag = 'scoped memory for tpu_custom_call.1']
    #allocation10 [shape = 'u8[4096]{0}', space=vmem, size = 0x1000, scoped, tag = 'output window, operand 0, single buffered']
    %10 = vsyncpa [#allocation3], 0
    %11 = vsyncpa [#allocation6], 0
    %12 = vsyncpa [#allocation9], 0
    %13 = vsyncpa [#allocation4], 0
    // Predicated region
    $region2: #{tpu_custom_call.1} parent=1 // pred_check
      _
    $region3: #{tpu_custom_call.1} parent=1 // pred_check_branch
      %15 = sbr.rel (0) target = $region5
    $region4: #{tpu_custom_call.1} parent=1 // pred_region
      %s17 = ssub.s32 128, 128
      %18 = vsyncadd [#allocation3], %s17
      %s20 = sshll.u32 [#allocation2], 4
      %s21 = int_to_ptr.vmem [resolvable:$true] %s20
      %23 = dma.hbm_to_vmem [thread:$0]  %s0, 128, %s21, [#allocation3]
    $region5: #{tpu_custom_call.1} parent=1 // pred_fallthru
      _
    // Predicated region
    $region6: #{tpu_custom_call.1} parent=1 // pred_check
      _
    $region7: #{tpu_custom_call.1} parent=1 // pred_check_branch
      %25 = sbr.rel (0) target = $region9
    $region8: #{tpu_custom_call.1} parent=1 // pred_region
      %s27 = ssub.s32 128, 128
      %28 = vsyncadd [#allocation6], %s27
      %s30 = sshll.u32 [#allocation5], 4
      %s31 = int_to_ptr.vmem [resolvable:$true] %s30
      %33 = dma.hbm_to_vmem [thread:$0]  %s1, 128, %s31, [#allocation6]
    $region9: #{tpu_custom_call.1} parent=1 // pred_fallthru
      _
    // Predicated region
    $region10: #{tpu_custom_call.1} parent=1 // pred_check
      _
    $region11: #{tpu_custom_call.1} parent=1 // pred_check_branch
      %35 = sbr.rel (0) target = $region13
    $region12: #{tpu_custom_call.1} parent=1 // pred_region
      %s37 = ssub.s32 2048, 2048
      %38 = vsyncadd [#allocation6], %s37
      %s39 = sshll.u32 [#allocation7], 4
      %s40 = int_to_ptr.vmem [resolvable:$true] %s39
      %45 = dma.hbm_to_vmem [thread:$0]  %s2, 2048, %s40, [#allocation6], 128, 128, 8
    $region13: #{tpu_custom_call.1} parent=1 // pred_fallthru
      _
    // Predicated region
    $region14: #{tpu_custom_call.1} parent=1 // pred_check
      _
    $region15: #{tpu_custom_call.1} parent=1 // pred_check_branch
      %47 = sbr.rel (0) target = $region17
    $region16: #{tpu_custom_call.1} parent=1 // pred_region
      %s49 = ssub.s32 2048, 2048
      %50 = vsyncadd [#allocation9], %s49
      %s51 = sshll.u32 [#allocation8], 4
      %s52 = int_to_ptr.vmem [resolvable:$true] %s51
      %57 = dma.hbm_to_vmem [thread:$0]  %s3, 2048, %s52, [#allocation9], 128, 128, 8
    $region17: #{tpu_custom_call.1} parent=1 // pred_fallthru
      _
    // Predicated region
    $region18: #{tpu_custom_call.1} parent=1 // pred_check
      _
    $region19: #{tpu_custom_call.1} parent=1 // pred_check_branch
      %59 = sbr.rel (0) target = $region21
    $region20: #{tpu_custom_call.1} parent=1 // pred_region
      _
    $region21: #{tpu_custom_call.1} parent=1 // pred_fallthru
      _
    // Predicated region
    $region22: #{tpu_custom_call.1} parent=1 // pred_check
      _
    $region23: #{tpu_custom_call.1} parent=1 // pred_check_branch
      %61 = sbr.rel (0) target = $region25
    $region24: #{tpu_custom_call.1} parent=1 // pred_region
      %62 = dma.done [#allocation3], 128
    $region25: #{tpu_custom_call.1} parent=1 // pred_fallthru
      _
    // Predicated region
    $region26: #{tpu_custom_call.1} parent=1 // pred_check
      _
    $region27: #{tpu_custom_call.1} parent=1 // pred_check_branch
      %64 = sbr.rel (0) target = $region29
    $region28: #{tpu_custom_call.1} parent=1 // pred_region
      %65 = dma.done [#allocation6], 128
    $region29: #{tpu_custom_call.1} parent=1 // pred_fallthru
      _
    // Predicated region
    $region30: #{tpu_custom_call.1} parent=1 // pred_check
      _
    $region31: #{tpu_custom_call.1} parent=1 // pred_check_branch
      %67 = sbr.rel (0) target = $region33
    $region32: #{tpu_custom_call.1} parent=1 // pred_region
      %68 = dma.done [#allocation6], 2048
    $region33: #{tpu_custom_call.1} parent=1 // pred_fallthru
      _
    // Predicated region
    $region34: #{tpu_custom_call.1} parent=1 // pred_check
      _
    $region35: #{tpu_custom_call.1} parent=1 // pred_check_branch
      %70 = sbr.rel (0) target = $region37
    $region36: #{tpu_custom_call.1} parent=1 // pred_region
      %71 = dma.done [#allocation9], 2048
    $region37: #{tpu_custom_call.1} parent=1 // pred_fallthru
      _
    %v72 = vld [vmem:[#allocation2] sm:$0xff]
    %v73 = vld [vmem:[#allocation7] sm:$0xff]
    %v74 = vld [vmem:[#allocation7 + $0x8] sm:$0xff]
    %v75 = vld [vmem:[#allocation7 + $0x10] sm:$0xff]
    %v76 = vld [vmem:[#allocation7 + $0x18] sm:$0xff]
    %v77 = vld [vmem:[#allocation7 + $0x20] sm:$0xff]
    %v78 = vld [vmem:[#allocation7 + $0x28] sm:$0xff]
    %v79 = vld [vmem:[#allocation7 + $0x30] sm:$0xff]
    %v80 = vld [vmem:[#allocation7 + $0x38] sm:$0xff]
    %v81 = vld [vmem:[#allocation7 + $0x40] sm:$0xff]
    %v82 = vld [vmem:[#allocation7 + $0x48] sm:$0xff]
    %v83 = vld [vmem:[#allocation7 + $0x50] sm:$0xff]
    %v84 = vld [vmem:[#allocation7 + $0x58] sm:$0xff]
    %v85 = vld [vmem:[#allocation7 + $0x60] sm:$0xff]
    %v86 = vld [vmem:[#allocation7 + $0x68] sm:$0xff]
    %v87 = vld [vmem:[#allocation7 + $0x70] sm:$0xff]
    %v88 = vld [vmem:[#allocation7 + $0x78] sm:$0xff]
    %v89 = vld [vmem:[#allocation5] sm:$0xff]
    %v90 = vld [vmem:[#allocation8] sm:$0xff]
    %v91 = vld [vmem:[#allocation8 + $0x8] sm:$0xff]
    %v92 = vld [vmem:[#allocation8 + $0x10] sm:$0xff]
    %v93 = vld [vmem:[#allocation8 + $0x18] sm:$0xff]
    %v94 = vld [vmem:[#allocation8 + $0x20] sm:$0xff]
    %v95 = vld [vmem:[#allocation8 + $0x28] sm:$0xff]
    %v96 = vld [vmem:[#allocation8 + $0x30] sm:$0xff]
    %v97 = vld [vmem:[#allocation8 + $0x38] sm:$0xff]
    %v98 = vld [vmem:[#allocation8 + $0x40] sm:$0xff]
    %v99 = vld [vmem:[#allocation8 + $0x48] sm:$0xff]
    %v100 = vld [vmem:[#allocation8 + $0x50] sm:$0xff]
    %v101 = vld [vmem:[#allocation8 + $0x58] sm:$0xff]
    %v102 = vld [vmem:[#allocation8 + $0x60] sm:$0xff]
    %v103 = vld [vmem:[#allocation8 + $0x68] sm:$0xff]
    %v104 = vld [vmem:[#allocation8 + $0x70] sm:$0xff]
    %v105 = vld [vmem:[#allocation8 + $0x78] sm:$0xff]
    %106 = vmatprep.subr.mxu0 0.0
    %107 = vmatpush1.msra.mxu0 %v90
    %108 = vmatprep.subr.mxu0 0.0
    %109 = vmatpush1.msra.mxu0 %v91
    %110 = vmatprep.subr.mxu0 0.0
    %111 = vmatpush1.msra.mxu0 %v92
    %112 = vmatprep.subr.mxu0 0.0
    %113 = vmatpush1.msra.mxu0 %v93
    %114 = vmatprep.subr.mxu0 0.0
    %115 = vmatpush1.msra.mxu0 %v94
    %116 = vmatprep.subr.mxu0 0.0
    %117 = vmatpush1.msra.mxu0 %v95
    %118 = vmatprep.subr.mxu0 0.0
    %119 = vmatpush1.msra.mxu0 %v96
    %120 = vmatprep.subr.mxu0 0.0
    %121 = vmatpush1.msra.mxu0 %v97
    %122 = vmatprep.subr.mxu0 0.0
    %123 = vmatpush1.msra.mxu0 %v98
    %124 = vmatprep.subr.mxu0 0.0
    %125 = vmatpush1.msra.mxu0 %v99
    %126 = vmatprep.subr.mxu0 0.0
    %127 = vmatpush1.msra.mxu0 %v100
    %128 = vmatprep.subr.mxu0 0.0
    %129 = vmatpush1.msra.mxu0 %v101
    %130 = vmatprep.subr.mxu0 0.0
    %131 = vmatpush1.msra.mxu0 %v102
    %132 = vmatprep.subr.mxu0 0.0
    %133 = vmatpush1.msra.mxu0 %v103
    %134 = vmatprep.subr.mxu0 0.0
    %135 = vmatpush1.msra.mxu0 %v104
    %136 = vmatprep.subr.mxu0 0.0
    %137 = vmatpush1.msra.mxu0 %v105
    %138 = vmatprep.subr.mxu0 0.0
    %139 = vmatpush1.msra.mxu0 0.0
    %140 = vmatprep.subr.mxu0 0.0
    %141 = vmatpush1.msra.mxu0 0.0
    %142 = vmatprep.subr.mxu0 0.0
    %143 = vmatpush1.msra.mxu0 0.0
    %144 = vmatprep.subr.mxu0 0.0
    %145 = vmatpush1.msra.mxu0 0.0
    %146 = vmatprep.subr.mxu0 0.0
    %147 = vmatpush1.msra.mxu0 0.0
    %148 = vmatprep.subr.mxu0 0.0
    %149 = vmatpush1.msra.mxu0 0.0
    %150 = vmatprep.subr.mxu0 0.0
    %151 = vmatpush1.msra.mxu0 0.0
    %152 = vmatprep.subr.mxu0 0.0
    %153 = vmatpush1.msra.mxu0 0.0
    %154 = vmatprep.subr.mxu0 0.0
    %155 = vmatpush1.msra.mxu0 0.0
    %156 = vmatprep.subr.mxu0 0.0
    %157 = vmatpush1.msra.mxu0 0.0
    %158 = vmatprep.subr.mxu0 0.0
    %159 = vmatpush1.msra.mxu0 0.0
    %160 = vmatprep.subr.mxu0 0.0
    %161 = vmatpush1.msra.mxu0 0.0
    %162 = vmatprep.subr.mxu0 0.0
    %163 = vmatpush1.msra.mxu0 0.0
    %164 = vmatprep.subr.mxu0 0.0
    %165 = vmatpush1.msra.mxu0 0.0
    %166 = vmatprep.subr.mxu0 0.0
    %167 = vmatpush1.msra.mxu0 0.0
    %168 = vmatprep.subr.mxu0 0.0
    %169 = vmatpush1.msra.mxu0 0.0
    %170 = vmatprep.mubr.f32.mxu0 0.0
    %171 = vmatmul.mubr.f32.gmra.mrb[0].mxu0 %v89
    %v172 = vpop.f32.mrb[0].mxu0
    %v173 = vadd.f32 0.0, %v172
    %v174 = vpop.f32.mrb[0].mxu0
    %175 = vdwg.mxu0
    %176 = vmatprep.subr.mxu0 0.0
    %177 = vmatpush1.msra.mxu0 %v73
    %178 = vmatprep.subr.mxu0 0.0
    %179 = vmatpush1.msra.mxu0 %v74
    %180 = vmatprep.subr.mxu0 0.0
    %181 = vmatpush1.msra.mxu0 %v75
    %182 = vmatprep.subr.mxu0 0.0
    %183 = vmatpush1.msra.mxu0 %v76
    %184 = vmatprep.subr.mxu0 0.0
    %185 = vmatpush1.msra.mxu0 %v77
    %186 = vmatprep.subr.mxu0 0.0
    %187 = vmatpush1.msra.mxu0 %v78
    %188 = vmatprep.subr.mxu0 0.0
    %189 = vmatpush1.msra.mxu0 %v79
    %190 = vmatprep.subr.mxu0 0.0
    %191 = vmatpush1.msra.mxu0 %v80
    %192 = vmatprep.subr.mxu0 0.0
    %193 = vmatpush1.msra.mxu0 %v81
    %194 = vmatprep.subr.mxu0 0.0
    %195 = vmatpush1.msra.mxu0 %v82
    %196 = vmatprep.subr.mxu0 0.0
    %197 = vmatpush1.msra.mxu0 %v83
    %198 = vmatprep.subr.mxu0 0.0
    %199 = vmatpush1.msra.mxu0 %v84
    %200 = vmatprep.subr.mxu0 0.0
    %201 = vmatpush1.msra.mxu0 %v85
    %202 = vmatprep.subr.mxu0 0.0
    %203 = vmatpush1.msra.mxu0 %v86
    %204 = vmatprep.subr.mxu0 0.0
    %205 = vmatpush1.msra.mxu0 %v87
    %206 = vmatprep.subr.mxu0 0.0
    %207 = vmatpush1.msra.mxu0 %v88
    %208 = vmatprep.subr.mxu0 0.0
    %209 = vmatpush1.msra.mxu0 0.0
    %210 = vmatprep.subr.mxu0 0.0
    %211 = vmatpush1.msra.mxu0 0.0
    %212 = vmatprep.subr.mxu0 0.0
    %213 = vmatpush1.msra.mxu0 0.0
    %214 = vmatprep.subr.mxu0 0.0
    %215 = vmatpush1.msra.mxu0 0.0
    %216 = vmatprep.subr.mxu0 0.0
    %217 = vmatpush1.msra.mxu0 0.0
    %218 = vmatprep.subr.mxu0 0.0
    %219 = vmatpush1.msra.mxu0 0.0
    %220 = vmatprep.subr.mxu0 0.0
    %221 = vmatpush1.msra.mxu0 0.0
    %222 = vmatprep.subr.mxu0 0.0
    %223 = vmatpush1.msra.mxu0 0.0
    %224 = vmatprep.subr.mxu0 0.0
    %225 = vmatpush1.msra.mxu0 0.0
    %226 = vmatprep.subr.mxu0 0.0
    %227 = vmatpush1.msra.mxu0 0.0
    %228 = vmatprep.subr.mxu0 0.0
    %229 = vmatpush1.msra.mxu0 0.0
    %230 = vmatprep.subr.mxu0 0.0
    %231 = vmatpush1.msra.mxu0 0.0
    %232 = vmatprep.subr.mxu0 0.0
    %233 = vmatpush1.msra.mxu0 0.0
    %234 = vmatprep.subr.mxu0 0.0
    %235 = vmatpush1.msra.mxu0 0.0
    %236 = vmatprep.subr.mxu0 0.0
    %237 = vmatpush1.msra.mxu0 0.0
    %238 = vmatprep.subr.mxu0 0.0
    %239 = vmatpush1.msra.mxu0 0.0
    %240 = vmatprep.mubr.f32.mxu0 0.0
    %241 = vmatmul.mubr.f32.gmra.mrb[0].mxu0 %v72
    %v242 = vpop.f32.mrb[0].mxu0
    %v243 = vadd.f32 %v173, %v242
    %v244 = vpop.f32.mrb[0].mxu0
    %245 = vdwg.mxu0
    %v246 = vld [vmem:[%s4] sm:$0x1]
    %v248 = vlaneseq
    %v249 = vshrl.u32 %v248, 7
    %v250 = vsub.s32 0, %v249
    %v251 = vrot.slane %v246, %v250
    %v253 = vadd.f32 %v243, %v251
    %v254 = vtanh.pop %v253
    %255 = vst [vmem:[#allocation10] sm:$0xff] %v254
    // Predicated region
    $region38: #{tpu_custom_call.1} parent=1 // pred_check
      _
    $region39: #{tpu_custom_call.1} parent=1 // pred_check_branch
      %257 = sbr.rel (0) target = $region41
    $region40: #{tpu_custom_call.1} parent=1 // pred_region
      %s259 = ssub.s32 128, 128
      %260 = vsyncadd [#allocation4], %s259
      %s262 = sshll.u32 [#allocation10], 4
      %s263 = int_to_ptr.vmem [resolvable:$true] %s262
      %265 = dma.vmem_to_hbm [thread:$0]  %s263, 128, %s5, [#allocation4]
    $region41: #{tpu_custom_call.1} parent=1 // pred_fallthru
      _
    // Predicated region
    $region42: #{tpu_custom_call.1} parent=1 // pred_check
      _
    $region43: #{tpu_custom_call.1} parent=1 // pred_check_branch
      %267 = sbr.rel (0) target = $region45
    $region44: #{tpu_custom_call.1} parent=1 // pred_region
      %268 = dma.done [#allocation4], 128
    $region45: #{tpu_custom_call.1} parent=1 // pred_fallthru
      _
    %269 = vsyncpa [#allocation3], 1
    %270 = vsyncpa [#allocation6], 1
    %271 = vsyncpa [#allocation9], 1
    %272 = vsyncpa [#allocation4], 1

</llo_original>
